<compile_context>
chip_gen: v6e
topology: v6e:2x2x1
jax: 0.10.0
libtpu: 0.0.40
codegen_flags: <defaults>
</compile_context>

<pallas_src>
import functools

import numpy as np
import jax
import jax.numpy as jnp
from jax.experimental import pallas as pl
from jax.experimental.pallas import tpu as pltpu

LANES = 128


# ----------------------------- Pallas kernel -----------------------------

def yolo_loss_kernel(feat_ref, out_ref, *, B, n_cls, inv_S):
    """One tile of grid cells.

    feat_ref : (F, r_block, 128) f32 — cell index on (sublane, lane).
      plane layout:
        [b*5 + 0..4]            pred box b : x, y, w, h, conf
        [B*5 + c]               pred class score c
        [B*5 + n_cls + 0..3]    target box : x, y, w, h
        [B*5 + n_cls + 4 + c]   target class c
        [B*5 + 2*n_cls + 4]     has-object mask (0./1.)
    out_ref  : (4, r_block, 128) f32 running partials, resident across grid
      axis 1: [cls_loss, noobj_raw, contain_loss, reg_raw].
    """
    @pl.when(pl.program_id(1) == 0)
    def _init():
        out_ref[...] = jnp.zeros_like(out_ref)

    base_cls = B * 5
    base_tb = base_cls + n_cls
    base_tc = base_tb + 4
    idx_mask = base_tc + n_cls

    m = feat_ref[idx_mask]                      # (r_block, 128)  0./1.
    obj = m > 0.5

    # ---- classification loss: sum_c m * (pred_c - tgt_c)^2  (pure VPU MAC) ----
    cls_tile = jnp.zeros_like(m)
    for c in range(n_cls):
        d = feat_ref[base_cls + c] - feat_ref[base_tc + c]
        cls_tile = cls_tile + d * d
    cls_tile = cls_tile * m

    # ---- target box corners (divide-free) ----
    tx = feat_ref[base_tb + 0]
    ty = feat_ref[base_tb + 1]
    tw = feat_ref[base_tb + 2]
    th = feat_ref[base_tb + 3]
    tx1 = tx * inv_S - 0.5 * tw
    ty1 = ty * inv_S - 0.5 * th
    tx2 = tx * inv_S + 0.5 * tw
    ty2 = ty * inv_S + 0.5 * th
    t_area = (tx2 - tx1) * (ty2 - ty1)

    # ---- per-box IoU, no-object confidence, best-box selection ----
    noobj_tile = jnp.zeros_like(m)
    best_iou = best_x = best_y = best_w = best_h = best_c = None
    for b in range(B):
        px = feat_ref[b * 5 + 0]
        py = feat_ref[b * 5 + 1]
        pw = feat_ref[b * 5 + 2]
        ph = feat_ref[b * 5 + 3]
        pc = feat_ref[b * 5 + 4]
        noobj_tile = noobj_tile + pc * pc

        px1 = px * inv_S - 0.5 * pw
        py1 = py * inv_S - 0.5 * ph
        px2 = px * inv_S + 0.5 * pw
        py2 = py * inv_S + 0.5 * ph
        iw = jnp.maximum(jnp.minimum(px2, tx2) - jnp.maximum(px1, tx1), 0.0)
        ih = jnp.maximum(jnp.minimum(py2, ty2) - jnp.maximum(py1, ty1), 0.0)
        inter = iw * ih
        p_area = (px2 - px1) * (py2 - py1)
        union = jnp.maximum(p_area + t_area - inter, 1e-12)  # NaN-safe for pads
        # EUP approximate reciprocal + one Newton step (no VALU vdiv).
        r = pl.reciprocal(union, approx=True)
        r = r * (2.0 - union * r)
        iou = inter * r

        if b == 0:
            best_iou, best_x, best_y = iou, px, py
            best_w, best_h, best_c = pw, ph, pc
        else:
            better = iou > best_iou            # strict '>' == first-max on ties
            best_iou = jnp.where(better, iou, best_iou)
            best_x = jnp.where(better, px, best_x)
            best_y = jnp.where(better, py, best_y)
            best_w = jnp.where(better, pw, best_w)
            best_h = jnp.where(better, ph, best_h)
            best_c = jnp.where(better, pc, best_c)
    noobj_tile = noobj_tile * (1.0 - m)

    # ---- containing-object confidence loss (select, NaN-safe) ----
    contain_tile = jnp.where(obj, (best_c - best_iou) ** 2, 0.0)

    # ---- regression loss: all four components sqrt'd, as in the module ----
    reg_per = ((jnp.sqrt(best_x) - jnp.sqrt(tx)) ** 2
               + (jnp.sqrt(best_y) - jnp.sqrt(ty)) ** 2
               + (jnp.sqrt(best_w) - jnp.sqrt(tw)) ** 2
               + (jnp.sqrt(best_h) - jnp.sqrt(th)) ** 2)
    reg_tile = jnp.where(obj, reg_per, 0.0)

    # ---- accumulate into the resident output block (no per-tile XLU reduce) ----
    out_ref[0] += cls_tile
    out_ref[1] += noobj_tile
    out_ref[2] += contain_tile
    out_ref[3] += reg_tile


# ----------------------------- wrapper (glue) -----------------------------

def yolo_loss_pallas(pred_tensor, target_boxes, target_cls, has_object_map,
                     S, B, l_coord, l_noobj, *,
                     cells_per_block=1024, n_par=2):
    N = pred_tensor.shape[0]
    n_cls = pred_tensor.shape[-1] - B * 5
    C = N * S * S

    r_block = cells_per_block // LANES
    assert cells_per_block % LANES == 0 and r_block % 8 == 0

    pred_flat = pred_tensor.reshape(C, B * 5 + n_cls).astype(jnp.float32)
    tb = target_boxes.reshape(C, 4).astype(jnp.float32)
    tc = target_cls.reshape(C, n_cls).astype(jnp.float32)
    m = has_object_map.reshape(C, 1).astype(jnp.float32)

    # Stack features, pad the cell axis, and re-layout so cells land on the
    # (sublane, lane) axes: (F, C_pad//128, 128).  Padded cells have mask=0 and
    # conf=0 so they contribute exactly 0 to every partial sum.
    feat = jnp.concatenate([pred_flat, tb, tc, m], axis=1)       # (C, F)
    F = feat.shape[1]
    chunk = n_par * cells_per_block
    C_pad = ((C + chunk - 1) // chunk) * chunk
    feat = jnp.pad(feat, ((0, C_pad - C), (0, 0)))
    feat = feat.T.reshape(F, C_pad // LANES, LANES)

    n_inner = C_pad // chunk          # reduction steps per parallel shard

    kernel = functools.partial(yolo_loss_kernel, B=B, n_cls=n_cls,
                               inv_S=float(1.0 / S))

    out = pl.pallas_call(
        kernel,
        out_shape=jax.ShapeDtypeStruct((n_par * 4, r_block, LANES), jnp.float32),
        grid_spec=pltpu.PrefetchScalarGridSpec(
            num_scalar_prefetch=0,
            grid=(n_par, n_inner),
            in_specs=[pl.BlockSpec(
                (F, r_block, LANES),
                lambda p, i: (0, p * n_inner + i, 0))],
            out_specs=pl.BlockSpec(
                (4, r_block, LANES),
                lambda p, i: (p, 0, 0)),
        ),
        compiler_params=pltpu.CompilerParams(
            dimension_semantics=("parallel", "arbitrary")),
    )(feat)

    # Tiny final reduction + scalar scaling done as XLA glue.
    partials = out.reshape(n_par, 4, r_block * LANES).sum(axis=(0, 2))   # (4,)
    cls_loss = partials[0]
    no_obj_loss = partials[1] * l_noobj
    contain_loss = partials[2]
    reg_loss = partials[3] * l_coord
    total_loss = (cls_loss + no_obj_loss + contain_loss + reg_loss) / N
    return dict(total_loss=total_loss, reg_loss=reg_loss,
                containing_obj_loss=contain_loss,
                no_obj_loss=no_obj_loss, cls_loss=cls_loss)


# ------------------------- numpy reference (check) -------------------------

def numpy_reference(pred, tb, tc, mask, S, B, l_coord, l_noobj):
    N = pred.shape[0]
    maskf = mask.astype(np.float32)
    pred_boxes = [pred[..., b * 5:(b + 1) * 5] for b in range(B)]
    pred_cls = pred[..., B * 5:]
    cls_loss = np.sum(maskf * np.sum((pred_cls - tc) ** 2, axis=-1))
    no_obj = sum(np.sum(pb[..., 4][~mask] ** 2) for pb in pred_boxes) * l_noobj

    pb_m = [pb[mask] for pb in pred_boxes]
    tb_m = tb[mask]

    def to_xyxy(b):
        x, y, w, h = b[:, 0], b[:, 1], b[:, 2], b[:, 3]
        return np.stack([x / S - w / 2, y / S - h / 2,
                         x / S + w / 2, y / S + h / 2], 1)

    t_xy = to_xyxy(tb_m)
    ious = []
    for b in range(B):
        p_xy = to_xyxy(pb_m[b][:, :4])
        lt = np.maximum(p_xy[:, :2], t_xy[:, :2])
        rb = np.minimum(p_xy[:, 2:], t_xy[:, 2:])
        wh = np.clip(rb - lt, 0.0, None)
        inter = wh[:, 0] * wh[:, 1]
        a1 = (p_xy[:, 2] - p_xy[:, 0]) * (p_xy[:, 3] - p_xy[:, 1])
        a2 = (t_xy[:, 2] - t_xy[:, 0]) * (t_xy[:, 3] - t_xy[:, 1])
        ious.append(inter / (a1 + a2 - inter))
    ious = np.stack(ious, 1)
    best_idx = np.argmax(ious, 1)
    best_iou = np.max(ious, 1)
    best_boxes = np.stack([pb_m[best_idx[i]][i] for i in range(tb_m.shape[0])], 0)
    reg = l_coord * np.sum((np.sqrt(best_boxes[:, :4]) - np.sqrt(tb_m)) ** 2)
    contain = np.sum((best_boxes[:, 4] - best_iou) ** 2)
    total = (cls_loss + no_obj + contain + reg) / N
    return dict(total_loss=total, reg_loss=reg, containing_obj_loss=contain,
                no_obj_loss=no_obj, cls_loss=cls_loss)


# --------------------------------- main ---------------------------------

if __name__ == "__main__":
    S, B = 4, 2
    l_coord, l_noobj = 5.0, 0.5
    N = 2
    n_cls = 20

    key = jax.random.PRNGKey(0)
    k1, k2, k3, k4 = jax.random.split(key, 4)
    # positive coords/sizes so sqrt() in the regression loss stays real,
    # matching the intended usage of the torch module.
    pred = jax.random.uniform(k1, (N, S, S, B * 5 + n_cls), jnp.float32, 0.05, 1.0)
    tboxes = jax.random.uniform(k2, (N, S, S, 4), jnp.float32, 0.05, 1.0)
    tcls = jax.random.uniform(k3, (N, S, S, n_cls), jnp.float32)
    mask = jax.random.bernoulli(k4, 0.5, (N, S, S))
    mask = mask.at[0, 0, 0].set(True)  # ensure at least one object cell

    out = yolo_loss_pallas(pred, tboxes, tcls, mask, S, B, l_coord, l_noobj)
    out = jax.tree_util.tree_map(jax.block_until_ready, out)

    ref = numpy_reference(np.asarray(pred), np.asarray(tboxes),
                          np.asarray(tcls), np.asarray(mask),
                          S, B, l_coord, l_noobj)
    for k in out:
        np.testing.assert_allclose(float(out[k]), float(ref[k]),
                                   rtol=5e-3, atol=5e-3)
    print("KERNEL_OK")
</pallas_src>

<mosaic_0001>
module attributes {stable_mosaic.version = 11 : i64} {
  func.func @yolo_loss_kernel(%arg0: i32, %arg1: i32, %arg2: memref<55x8x128xf32, #tpu.memory_space<vmem>>, %arg3: memref<4x8x128xf32, #tpu.memory_space<vmem>>) attributes {dimension_semantics = [#tpu.dimension_semantics<parallel>, #tpu.dimension_semantics<arbitrary>], iteration_bounds = array<i64: 2, 1>, scalar_prefetch = 0 : i64, scratch_operands = 0 : i64, tpu.core_type = #tpu.core_type<tc>, window_params = [{transform_indices = @transform_0, window_bounds = array<i64: 55, 8, 128>}, {transform_indices = @transform_1, window_bounds = array<i64: 4, 8, 128>}]} {
    %c0_i32 = arith.constant 0 : i32
    %0 = arith.cmpi eq, %arg1, %c0_i32 : i32
    %1 = arith.extui %0 : i1 to i32
    %c0_i32_0 = arith.constant 0 : i32
    %2 = arith.cmpi ne, %1, %c0_i32_0 : i32
    scf.if %2 {
      %cst_172 = arith.constant 0.000000e+00 : f32
      %352 = vector.broadcast %cst_172 : f32 to vector<4x8x128xf32>
      %c0_173 = arith.constant 0 : index
      %c0_174 = arith.constant 0 : index
      %c0_175 = arith.constant 0 : index
      %353 = vector.load %arg3[%c0_173, %c0_174, %c0_175] : memref<4x8x128xf32, #tpu.memory_space<vmem>>, vector<4x8x128xf32>
      tpu.vector_store %arg3[%c0_173, %c0_174, %c0_175], %352 {strides = array<i32>} : memref<4x8x128xf32, #tpu.memory_space<vmem>>, vector<4x8x128xf32>,
    } else {
    }
    %c54 = arith.constant 54 : index
    %c0 = arith.constant 0 : index
    %c0_1 = arith.constant 0 : index
    %3 = vector.load %arg2[%c54, %c0, %c0_1] : memref<55x8x128xf32, #tpu.memory_space<vmem>>, vector<1x8x128xf32>
    %4 = vector.shape_cast %3 : vector<1x8x128xf32> to vector<8x128xf32>
    %cst = arith.constant 5.000000e-01 : f32
    %5 = vector.broadcast %cst : f32 to vector<8x128xf32>
    %6 = arith.cmpf ogt, %4, %5 : vector<8x128xf32>
    %cst_2 = arith.constant 0.000000e+00 : f32
    %7 = vector.broadcast %cst_2 : f32 to vector<8x128xf32>
    %c10 = arith.constant 10 : index
    %c0_3 = arith.constant 0 : index
    %c0_4 = arith.constant 0 : index
    %8 = vector.load %arg2[%c10, %c0_3, %c0_4] : memref<55x8x128xf32, #tpu.memory_space<vmem>>, vector<1x8x128xf32>
    %9 = vector.shape_cast %8 : vector<1x8x128xf32> to vector<8x128xf32>
    %c34 = arith.constant 34 : index
    %c0_5 = arith.constant 0 : index
    %c0_6 = arith.constant 0 : index
    %10 = vector.load %arg2[%c34, %c0_5, %c0_6] : memref<55x8x128xf32, #tpu.memory_space<vmem>>, vector<1x8x128xf32>
    %11 = vector.shape_cast %10 : vector<1x8x128xf32> to vector<8x128xf32>
    %12 = arith.subf %9, %11 : vector<8x128xf32>
    %13 = arith.mulf %12, %12 : vector<8x128xf32>
    %14 = arith.addf %7, %13 : vector<8x128xf32>
    %c11 = arith.constant 11 : index
    %c0_7 = arith.constant 0 : index
    %c0_8 = arith.constant 0 : index
    %15 = vector.load %arg2[%c11, %c0_7, %c0_8] : memref<55x8x128xf32, #tpu.memory_space<vmem>>, vector<1x8x128xf32>
    %16 = vector.shape_cast %15 : vector<1x8x128xf32> to vector<8x128xf32>
    %c35 = arith.constant 35 : index
    %c0_9 = arith.constant 0 : index
    %c0_10 = arith.constant 0 : index
    %17 = vector.load %arg2[%c35, %c0_9, %c0_10] : memref<55x8x128xf32, #tpu.memory_space<vmem>>, vector<1x8x128xf32>
    %18 = vector.shape_cast %17 : vector<1x8x128xf32> to vector<8x128xf32>
    %19 = arith.subf %16, %18 : vector<8x128xf32>
    %20 = arith.mulf %19, %19 : vector<8x128xf32>
    %21 = arith.addf %14, %20 : vector<8x128xf32>
    %c12 = arith.constant 12 : index
    %c0_11 = arith.constant 0 : index
    %c0_12 = arith.constant 0 : index
    %22 = vector.load %arg2[%c12, %c0_11, %c0_12] : memref<55x8x128xf32, #tpu.memory_space<vmem>>, vector<1x8x128xf32>
    %23 = vector.shape_cast %22 : vector<1x8x128xf32> to vector<8x128xf32>
    %c36 = arith.constant 36 : index
    %c0_13 = arith.constant 0 : index
    %c0_14 = arith.constant 0 : index
    %24 = vector.load %arg2[%c36, %c0_13, %c0_14] : memref<55x8x128xf32, #tpu.memory_space<vmem>>, vector<1x8x128xf32>
    %25 = vector.shape_cast %24 : vector<1x8x128xf32> to vector<8x128xf32>
    %26 = arith.subf %23, %25 : vector<8x128xf32>
    %27 = arith.mulf %26, %26 : vector<8x128xf32>
    %28 = arith.addf %21, %27 : vector<8x128xf32>
    %c13 = arith.constant 13 : index
    %c0_15 = arith.constant 0 : index
    %c0_16 = arith.constant 0 : index
    %29 = vector.load %arg2[%c13, %c0_15, %c0_16] : memref<55x8x128xf32, #tpu.memory_space<vmem>>, vector<1x8x128xf32>
    %30 = vector.shape_cast %29 : vector<1x8x128xf32> to vector<8x128xf32>
    %c37 = arith.constant 37 : index
    %c0_17 = arith.constant 0 : index
    %c0_18 = arith.constant 0 : index
    %31 = vector.load %arg2[%c37, %c0_17, %c0_18] : memref<55x8x128xf32, #tpu.memory_space<vmem>>, vector<1x8x128xf32>
    %32 = vector.shape_cast %31 : vector<1x8x128xf32> to vector<8x128xf32>
    %33 = arith.subf %30, %32 : vector<8x128xf32>
    %34 = arith.mulf %33, %33 : vector<8x128xf32>
    %35 = arith.addf %28, %34 : vector<8x128xf32>
    %c14 = arith.constant 14 : index
    %c0_19 = arith.constant 0 : index
    %c0_20 = arith.constant 0 : index
    %36 = vector.load %arg2[%c14, %c0_19, %c0_20] : memref<55x8x128xf32, #tpu.memory_space<vmem>>, vector<1x8x128xf32>
    %37 = vector.shape_cast %36 : vector<1x8x128xf32> to vector<8x128xf32>
    %c38 = arith.constant 38 : index
    %c0_21 = arith.constant 0 : index
    %c0_22 = arith.constant 0 : index
    %38 = vector.load %arg2[%c38, %c0_21, %c0_22] : memref<55x8x128xf32, #tpu.memory_space<vmem>>, vector<1x8x128xf32>
    %39 = vector.shape_cast %38 : vector<1x8x128xf32> to vector<8x128xf32>
    %40 = arith.subf %37, %39 : vector<8x128xf32>
    %41 = arith.mulf %40, %40 : vector<8x128xf32>
    %42 = arith.addf %35, %41 : vector<8x128xf32>
    %c15 = arith.constant 15 : index
    %c0_23 = arith.constant 0 : index
    %c0_24 = arith.constant 0 : index
    %43 = vector.load %arg2[%c15, %c0_23, %c0_24] : memref<55x8x128xf32, #tpu.memory_space<vmem>>, vector<1x8x128xf32>
    %44 = vector.shape_cast %43 : vector<1x8x128xf32> to vector<8x128xf32>
    %c39 = arith.constant 39 : index
    %c0_25 = arith.constant 0 : index
    %c0_26 = arith.constant 0 : index
    %45 = vector.load %arg2[%c39, %c0_25, %c0_26] : memref<55x8x128xf32, #tpu.memory_space<vmem>>, vector<1x8x128xf32>
    %46 = vector.shape_cast %45 : vector<1x8x128xf32> to vector<8x128xf32>
    %47 = arith.subf %44, %46 : vector<8x128xf32>
    %48 = arith.mulf %47, %47 : vector<8x128xf32>
    %49 = arith.addf %42, %48 : vector<8x128xf32>
    %c16 = arith.constant 16 : index
    %c0_27 = arith.constant 0 : index
    %c0_28 = arith.constant 0 : index
    %50 = vector.load %arg2[%c16, %c0_27, %c0_28] : memref<55x8x128xf32, #tpu.memory_space<vmem>>, vector<1x8x128xf32>
    %51 = vector.shape_cast %50 : vector<1x8x128xf32> to vector<8x128xf32>
    %c40 = arith.constant 40 : index
    %c0_29 = arith.constant 0 : index
    %c0_30 = arith.constant 0 : index
    %52 = vector.load %arg2[%c40, %c0_29, %c0_30] : memref<55x8x128xf32, #tpu.memory_space<vmem>>, vector<1x8x128xf32>
    %53 = vector.shape_cast %52 : vector<1x8x128xf32> to vector<8x128xf32>
    %54 = arith.subf %51, %53 : vector<8x128xf32>
    %55 = arith.mulf %54, %54 : vector<8x128xf32>
    %56 = arith.addf %49, %55 : vector<8x128xf32>
    %c17 = arith.constant 17 : index
    %c0_31 = arith.constant 0 : index
    %c0_32 = arith.constant 0 : index
    %57 = vector.load %arg2[%c17, %c0_31, %c0_32] : memref<55x8x128xf32, #tpu.memory_space<vmem>>, vector<1x8x128xf32>
    %58 = vector.shape_cast %57 : vector<1x8x128xf32> to vector<8x128xf32>
    %c41 = arith.constant 41 : index
    %c0_33 = arith.constant 0 : index
    %c0_34 = arith.constant 0 : index
    %59 = vector.load %arg2[%c41, %c0_33, %c0_34] : memref<55x8x128xf32, #tpu.memory_space<vmem>>, vector<1x8x128xf32>
    %60 = vector.shape_cast %59 : vector<1x8x128xf32> to vector<8x128xf32>
    %61 = arith.subf %58, %60 : vector<8x128xf32>
    %62 = arith.mulf %61, %61 : vector<8x128xf32>
    %63 = arith.addf %56, %62 : vector<8x128xf32>
    %c18 = arith.constant 18 : index
    %c0_35 = arith.constant 0 : index
    %c0_36 = arith.constant 0 : index
    %64 = vector.load %arg2[%c18, %c0_35, %c0_36] : memref<55x8x128xf32, #tpu.memory_space<vmem>>, vector<1x8x128xf32>
    %65 = vector.shape_cast %64 : vector<1x8x128xf32> to vector<8x128xf32>
    %c42 = arith.constant 42 : index
    %c0_37 = arith.constant 0 : index
    %c0_38 = arith.constant 0 : index
    %66 = vector.load %arg2[%c42, %c0_37, %c0_38] : memref<55x8x128xf32, #tpu.memory_space<vmem>>, vector<1x8x128xf32>
    %67 = vector.shape_cast %66 : vector<1x8x128xf32> to vector<8x128xf32>
    %68 = arith.subf %65, %67 : vector<8x128xf32>
    %69 = arith.mulf %68, %68 : vector<8x128xf32>
    %70 = arith.addf %63, %69 : vector<8x128xf32>
    %c19 = arith.constant 19 : index
    %c0_39 = arith.constant 0 : index
    %c0_40 = arith.constant 0 : index
    %71 = vector.load %arg2[%c19, %c0_39, %c0_40] : memref<55x8x128xf32, #tpu.memory_space<vmem>>, vector<1x8x128xf32>
    %72 = vector.shape_cast %71 : vector<1x8x128xf32> to vector<8x128xf32>
    %c43 = arith.constant 43 : index
    %c0_41 = arith.constant 0 : index
    %c0_42 = arith.constant 0 : index
    %73 = vector.load %arg2[%c43, %c0_41, %c0_42] : memref<55x8x128xf32, #tpu.memory_space<vmem>>, vector<1x8x128xf32>
    %74 = vector.shape_cast %73 : vector<1x8x128xf32> to vector<8x128xf32>
    %75 = arith.subf %72, %74 : vector<8x128xf32>
    %76 = arith.mulf %75, %75 : vector<8x128xf32>
    %77 = arith.addf %70, %76 : vector<8x128xf32>
    %c20 = arith.constant 20 : index
    %c0_43 = arith.constant 0 : index
    %c0_44 = arith.constant 0 : index
    %78 = vector.load %arg2[%c20, %c0_43, %c0_44] : memref<55x8x128xf32, #tpu.memory_space<vmem>>, vector<1x8x128xf32>
    %79 = vector.shape_cast %78 : vector<1x8x128xf32> to vector<8x128xf32>
    %c44 = arith.constant 44 : index
    %c0_45 = arith.constant 0 : index
    %c0_46 = arith.constant 0 : index
    %80 = vector.load %arg2[%c44, %c0_45, %c0_46] : memref<55x8x128xf32, #tpu.memory_space<vmem>>, vector<1x8x128xf32>
    %81 = vector.shape_cast %80 : vector<1x8x128xf32> to vector<8x128xf32>
    %82 = arith.subf %79, %81 : vector<8x128xf32>
    %83 = arith.mulf %82, %82 : vector<8x128xf32>
    %84 = arith.addf %77, %83 : vector<8x128xf32>
    %c21 = arith.constant 21 : index
    %c0_47 = arith.constant 0 : index
    %c0_48 = arith.constant 0 : index
    %85 = vector.load %arg2[%c21, %c0_47, %c0_48] : memref<55x8x128xf32, #tpu.memory_space<vmem>>, vector<1x8x128xf32>
    %86 = vector.shape_cast %85 : vector<1x8x128xf32> to vector<8x128xf32>
    %c45 = arith.constant 45 : index
    %c0_49 = arith.constant 0 : index
    %c0_50 = arith.constant 0 : index
    %87 = vector.load %arg2[%c45, %c0_49, %c0_50] : memref<55x8x128xf32, #tpu.memory_space<vmem>>, vector<1x8x128xf32>
    %88 = vector.shape_cast %87 : vector<1x8x128xf32> to vector<8x128xf32>
    %89 = arith.subf %86, %88 : vector<8x128xf32>
    %90 = arith.mulf %89, %89 : vector<8x128xf32>
    %91 = arith.addf %84, %90 : vector<8x128xf32>
    %c22 = arith.constant 22 : index
    %c0_51 = arith.constant 0 : index
    %c0_52 = arith.constant 0 : index
    %92 = vector.load %arg2[%c22, %c0_51, %c0_52] : memref<55x8x128xf32, #tpu.memory_space<vmem>>, vector<1x8x128xf32>
    %93 = vector.shape_cast %92 : vector<1x8x128xf32> to vector<8x128xf32>
    %c46 = arith.constant 46 : index
    %c0_53 = arith.constant 0 : index
    %c0_54 = arith.constant 0 : index
    %94 = vector.load %arg2[%c46, %c0_53, %c0_54] : memref<55x8x128xf32, #tpu.memory_space<vmem>>, vector<1x8x128xf32>
    %95 = vector.shape_cast %94 : vector<1x8x128xf32> to vector<8x128xf32>
    %96 = arith.subf %93, %95 : vector<8x128xf32>
    %97 = arith.mulf %96, %96 : vector<8x128xf32>
    %98 = arith.addf %91, %97 : vector<8x128xf32>
    %c23 = arith.constant 23 : index
    %c0_55 = arith.constant 0 : index
    %c0_56 = arith.constant 0 : index
    %99 = vector.load %arg2[%c23, %c0_55, %c0_56] : memref<55x8x128xf32, #tpu.memory_space<vmem>>, vector<1x8x128xf32>
    %100 = vector.shape_cast %99 : vector<1x8x128xf32> to vector<8x128xf32>
    %c47 = arith.constant 47 : index
    %c0_57 = arith.constant 0 : index
    %c0_58 = arith.constant 0 : index
    %101 = vector.load %arg2[%c47, %c0_57, %c0_58] : memref<55x8x128xf32, #tpu.memory_space<vmem>>, vector<1x8x128xf32>
    %102 = vector.shape_cast %101 : vector<1x8x128xf32> to vector<8x128xf32>
    %103 = arith.subf %100, %102 : vector<8x128xf32>
    %104 = arith.mulf %103, %103 : vector<8x128xf32>
    %105 = arith.addf %98, %104 : vector<8x128xf32>
    %c24 = arith.constant 24 : index
    %c0_59 = arith.constant 0 : index
    %c0_60 = arith.constant 0 : index
    %106 = vector.load %arg2[%c24, %c0_59, %c0_60] : memref<55x8x128xf32, #tpu.memory_space<vmem>>, vector<1x8x128xf32>
    %107 = vector.shape_cast %106 : vector<1x8x128xf32> to vector<8x128xf32>
    %c48 = arith.constant 48 : index
    %c0_61 = arith.constant 0 : index
    %c0_62 = arith.constant 0 : index
    %108 = vector.load %arg2[%c48, %c0_61, %c0_62] : memref<55x8x128xf32, #tpu.memory_space<vmem>>, vector<1x8x128xf32>
    %109 = vector.shape_cast %108 : vector<1x8x128xf32> to vector<8x128xf32>
    %110 = arith.subf %107, %109 : vector<8x128xf32>
    %111 = arith.mulf %110, %110 : vector<8x128xf32>
    %112 = arith.addf %105, %111 : vector<8x128xf32>
    %c25 = arith.constant 25 : index
    %c0_63 = arith.constant 0 : index
    %c0_64 = arith.constant 0 : index
    %113 = vector.load %arg2[%c25, %c0_63, %c0_64] : memref<55x8x128xf32, #tpu.memory_space<vmem>>, vector<1x8x128xf32>
    %114 = vector.shape_cast %113 : vector<1x8x128xf32> to vector<8x128xf32>
    %c49 = arith.constant 49 : index
    %c0_65 = arith.constant 0 : index
    %c0_66 = arith.constant 0 : index
    %115 = vector.load %arg2[%c49, %c0_65, %c0_66] : memref<55x8x128xf32, #tpu.memory_space<vmem>>, vector<1x8x128xf32>
    %116 = vector.shape_cast %115 : vector<1x8x128xf32> to vector<8x128xf32>
    %117 = arith.subf %114, %116 : vector<8x128xf32>
    %118 = arith.mulf %117, %117 : vector<8x128xf32>
    %119 = arith.addf %112, %118 : vector<8x128xf32>
    %c26 = arith.constant 26 : index
    %c0_67 = arith.constant 0 : index
    %c0_68 = arith.constant 0 : index
    %120 = vector.load %arg2[%c26, %c0_67, %c0_68] : memref<55x8x128xf32, #tpu.memory_space<vmem>>, vector<1x8x128xf32>
    %121 = vector.shape_cast %120 : vector<1x8x128xf32> to vector<8x128xf32>
    %c50 = arith.constant 50 : index
    %c0_69 = arith.constant 0 : index
    %c0_70 = arith.constant 0 : index
    %122 = vector.load %arg2[%c50, %c0_69, %c0_70] : memref<55x8x128xf32, #tpu.memory_space<vmem>>, vector<1x8x128xf32>
    %123 = vector.shape_cast %122 : vector<1x8x128xf32> to vector<8x128xf32>
    %124 = arith.subf %121, %123 : vector<8x128xf32>
    %125 = arith.mulf %124, %124 : vector<8x128xf32>
    %126 = arith.addf %119, %125 : vector<8x128xf32>
    %c27 = arith.constant 27 : index
    %c0_71 = arith.constant 0 : index
    %c0_72 = arith.constant 0 : index
    %127 = vector.load %arg2[%c27, %c0_71, %c0_72] : memref<55x8x128xf32, #tpu.memory_space<vmem>>, vector<1x8x128xf32>
    %128 = vector.shape_cast %127 : vector<1x8x128xf32> to vector<8x128xf32>
    %c51 = arith.constant 51 : index
    %c0_73 = arith.constant 0 : index
    %c0_74 = arith.constant 0 : index
    %129 = vector.load %arg2[%c51, %c0_73, %c0_74] : memref<55x8x128xf32, #tpu.memory_space<vmem>>, vector<1x8x128xf32>
    %130 = vector.shape_cast %129 : vector<1x8x128xf32> to vector<8x128xf32>
    %131 = arith.subf %128, %130 : vector<8x128xf32>
    %132 = arith.mulf %131, %131 : vector<8x128xf32>
    %133 = arith.addf %126, %132 : vector<8x128xf32>
    %c28 = arith.constant 28 : index
    %c0_75 = arith.constant 0 : index
    %c0_76 = arith.constant 0 : index
    %134 = vector.load %arg2[%c28, %c0_75, %c0_76] : memref<55x8x128xf32, #tpu.memory_space<vmem>>, vector<1x8x128xf32>
    %135 = vector.shape_cast %134 : vector<1x8x128xf32> to vector<8x128xf32>
    %c52 = arith.constant 52 : index
    %c0_77 = arith.constant 0 : index
    %c0_78 = arith.constant 0 : index
    %136 = vector.load %arg2[%c52, %c0_77, %c0_78] : memref<55x8x128xf32, #tpu.memory_space<vmem>>, vector<1x8x128xf32>
    %137 = vector.shape_cast %136 : vector<1x8x128xf32> to vector<8x128xf32>
    %138 = arith.subf %135, %137 : vector<8x128xf32>
    %139 = arith.mulf %138, %138 : vector<8x128xf32>
    %140 = arith.addf %133, %139 : vector<8x128xf32>
    %c29 = arith.constant 29 : index
    %c0_79 = arith.constant 0 : index
    %c0_80 = arith.constant 0 : index
    %141 = vector.load %arg2[%c29, %c0_79, %c0_80] : memref<55x8x128xf32, #tpu.memory_space<vmem>>, vector<1x8x128xf32>
    %142 = vector.shape_cast %141 : vector<1x8x128xf32> to vector<8x128xf32>
    %c53 = arith.constant 53 : index
    %c0_81 = arith.constant 0 : index
    %c0_82 = arith.constant 0 : index
    %143 = vector.load %arg2[%c53, %c0_81, %c0_82] : memref<55x8x128xf32, #tpu.memory_space<vmem>>, vector<1x8x128xf32>
    %144 = vector.shape_cast %143 : vector<1x8x128xf32> to vector<8x128xf32>
    %145 = arith.subf %142, %144 : vector<8x128xf32>
    %146 = arith.mulf %145, %145 : vector<8x128xf32>
    %147 = arith.addf %140, %146 : vector<8x128xf32>
    %148 = arith.mulf %147, %4 : vector<8x128xf32>
    %c30 = arith.constant 30 : index
    %c0_83 = arith.constant 0 : index
    %c0_84 = arith.constant 0 : index
    %149 = vector.load %arg2[%c30, %c0_83, %c0_84] : memref<55x8x128xf32, #tpu.memory_space<vmem>>, vector<1x8x128xf32>
    %150 = vector.shape_cast %149 : vector<1x8x128xf32> to vector<8x128xf32>
    %c31 = arith.constant 31 : index
    %c0_85 = arith.constant 0 : index
    %c0_86 = arith.constant 0 : index
    %151 = vector.load %arg2[%c31, %c0_85, %c0_86] : memref<55x8x128xf32, #tpu.memory_space<vmem>>, vector<1x8x128xf32>
    %152 = vector.shape_cast %151 : vector<1x8x128xf32> to vector<8x128xf32>
    %c32 = arith.constant 32 : index
    %c0_87 = arith.constant 0 : index
    %c0_88 = arith.constant 0 : index
    %153 = vector.load %arg2[%c32, %c0_87, %c0_88] : memref<55x8x128xf32, #tpu.memory_space<vmem>>, vector<1x8x128xf32>
    %154 = vector.shape_cast %153 : vector<1x8x128xf32> to vector<8x128xf32>
    %c33 = arith.constant 33 : index
    %c0_89 = arith.constant 0 : index
    %c0_90 = arith.constant 0 : index
    %155 = vector.load %arg2[%c33, %c0_89, %c0_90] : memref<55x8x128xf32, #tpu.memory_space<vmem>>, vector<1x8x128xf32>
    %156 = vector.shape_cast %155 : vector<1x8x128xf32> to vector<8x128xf32>
    %cst_91 = arith.constant 2.500000e-01 : f32
    %157 = vector.broadcast %cst_91 : f32 to vector<8x128xf32>
    %158 = arith.mulf %150, %157 : vector<8x128xf32>
    %cst_92 = arith.constant 5.000000e-01 : f32
    %159 = vector.broadcast %cst_92 : f32 to vector<8x128xf32>
    %160 = arith.mulf %159, %154 : vector<8x128xf32>
    %161 = arith.subf %158, %160 : vector<8x128xf32>
    %cst_93 = arith.constant 2.500000e-01 : f32
    %162 = vector.broadcast %cst_93 : f32 to vector<8x128xf32>
    %163 = arith.mulf %152, %162 : vector<8x128xf32>
    %cst_94 = arith.constant 5.000000e-01 : f32
    %164 = vector.broadcast %cst_94 : f32 to vector<8x128xf32>
    %165 = arith.mulf %164, %156 : vector<8x128xf32>
    %166 = arith.subf %163, %165 : vector<8x128xf32>
    %cst_95 = arith.constant 2.500000e-01 : f32
    %167 = vector.broadcast %cst_95 : f32 to vector<8x128xf32>
    %168 = arith.mulf %150, %167 : vector<8x128xf32>
    %cst_96 = arith.constant 5.000000e-01 : f32
    %169 = vector.broadcast %cst_96 : f32 to vector<8x128xf32>
    %170 = arith.mulf %169, %154 : vector<8x128xf32>
    %171 = arith.addf %168, %170 : vector<8x128xf32>
    %cst_97 = arith.constant 2.500000e-01 : f32
    %172 = vector.broadcast %cst_97 : f32 to vector<8x128xf32>
    %173 = arith.mulf %152, %172 : vector<8x128xf32>
    %cst_98 = arith.constant 5.000000e-01 : f32
    %174 = vector.broadcast %cst_98 : f32 to vector<8x128xf32>
    %175 = arith.mulf %174, %156 : vector<8x128xf32>
    %176 = arith.addf %173, %175 : vector<8x128xf32>
    %177 = arith.subf %171, %161 : vector<8x128xf32>
    %178 = arith.subf %176, %166 : vector<8x128xf32>
    %179 = arith.mulf %177, %178 : vector<8x128xf32>
    %cst_99 = arith.constant 0.000000e+00 : f32
    %180 = vector.broadcast %cst_99 : f32 to vector<8x128xf32>
    %c0_100 = arith.constant 0 : index
    %c0_101 = arith.constant 0 : index
    %c0_102 = arith.constant 0 : index
    %181 = vector.load %arg2[%c0_100, %c0_101, %c0_102] : memref<55x8x128xf32, #tpu.memory_space<vmem>>, vector<1x8x128xf32>
    %182 = vector.shape_cast %181 : vector<1x8x128xf32> to vector<8x128xf32>
    %c1 = arith.constant 1 : index
    %c0_103 = arith.constant 0 : index
    %c0_104 = arith.constant 0 : index
    %183 = vector.load %arg2[%c1, %c0_103, %c0_104] : memref<55x8x128xf32, #tpu.memory_space<vmem>>, vector<1x8x128xf32>
    %184 = vector.shape_cast %183 : vector<1x8x128xf32> to vector<8x128xf32>
    %c2 = arith.constant 2 : index
    %c0_105 = arith.constant 0 : index
    %c0_106 = arith.constant 0 : index
    %185 = vector.load %arg2[%c2, %c0_105, %c0_106] : memref<55x8x128xf32, #tpu.memory_space<vmem>>, vector<1x8x128xf32>
    %186 = vector.shape_cast %185 : vector<1x8x128xf32> to vector<8x128xf32>
    %c3 = arith.constant 3 : index
    %c0_107 = arith.constant 0 : index
    %c0_108 = arith.constant 0 : index
    %187 = vector.load %arg2[%c3, %c0_107, %c0_108] : memref<55x8x128xf32, #tpu.memory_space<vmem>>, vector<1x8x128xf32>
    %188 = vector.shape_cast %187 : vector<1x8x128xf32> to vector<8x128xf32>
    %c4 = arith.constant 4 : index
    %c0_109 = arith.constant 0 : index
    %c0_110 = arith.constant 0 : index
    %189 = vector.load %arg2[%c4, %c0_109, %c0_110] : memref<55x8x128xf32, #tpu.memory_space<vmem>>, vector<1x8x128xf32>
    %190 = vector.shape_cast %189 : vector<1x8x128xf32> to vector<8x128xf32>
    %191 = arith.mulf %190, %190 : vector<8x128xf32>
    %192 = arith.addf %180, %191 : vector<8x128xf32>
    %cst_111 = arith.constant 2.500000e-01 : f32
    %193 = vector.broadcast %cst_111 : f32 to vector<8x128xf32>
    %194 = arith.mulf %182, %193 : vector<8x128xf32>
    %cst_112 = arith.constant 5.000000e-01 : f32
    %195 = vector.broadcast %cst_112 : f32 to vector<8x128xf32>
    %196 = arith.mulf %195, %186 : vector<8x128xf32>
    %197 = arith.subf %194, %196 : vector<8x128xf32>
    %cst_113 = arith.constant 2.500000e-01 : f32
    %198 = vector.broadcast %cst_113 : f32 to vector<8x128xf32>
    %199 = arith.mulf %184, %198 : vector<8x128xf32>
    %cst_114 = arith.constant 5.000000e-01 : f32
    %200 = vector.broadcast %cst_114 : f32 to vector<8x128xf32>
    %201 = arith.mulf %200, %188 : vector<8x128xf32>
    %202 = arith.subf %199, %201 : vector<8x128xf32>
    %cst_115 = arith.constant 2.500000e-01 : f32
    %203 = vector.broadcast %cst_115 : f32 to vector<8x128xf32>
    %204 = arith.mulf %182, %203 : vector<8x128xf32>
    %cst_116 = arith.constant 5.000000e-01 : f32
    %205 = vector.broadcast %cst_116 : f32 to vector<8x128xf32>
    %206 = arith.mulf %205, %186 : vector<8x128xf32>
    %207 = arith.addf %204, %206 : vector<8x128xf32>
    %cst_117 = arith.constant 2.500000e-01 : f32
    %208 = vector.broadcast %cst_117 : f32 to vector<8x128xf32>
    %209 = arith.mulf %184, %208 : vector<8x128xf32>
    %cst_118 = arith.constant 5.000000e-01 : f32
    %210 = vector.broadcast %cst_118 : f32 to vector<8x128xf32>
    %211 = arith.mulf %210, %188 : vector<8x128xf32>
    %212 = arith.addf %209, %211 : vector<8x128xf32>
    %213 = arith.minimumf %207, %171 : vector<8x128xf32>
    %214 = arith.maximumf %197, %161 : vector<8x128xf32>
    %215 = arith.subf %213, %214 : vector<8x128xf32>
    %cst_119 = arith.constant 0.000000e+00 : f32
    %216 = vector.broadcast %cst_119 : f32 to vector<8x128xf32>
    %217 = arith.maximumf %215, %216 : vector<8x128xf32>
    %218 = arith.minimumf %212, %176 : vector<8x128xf32>
    %219 = arith.maximumf %202, %166 : vector<8x128xf32>
    %220 = arith.subf %218, %219 : vector<8x128xf32>
    %cst_120 = arith.constant 0.000000e+00 : f32
    %221 = vector.broadcast %cst_120 : f32 to vector<8x128xf32>
    %222 = arith.maximumf %220, %221 : vector<8x128xf32>
    %223 = arith.mulf %217, %222 : vector<8x128xf32>
    %224 = arith.subf %207, %197 : vector<8x128xf32>
    %225 = arith.subf %212, %202 : vector<8x128xf32>
    %226 = arith.mulf %224, %225 : vector<8x128xf32>
    %227 = arith.addf %226, %179 : vector<8x128xf32>
    %228 = arith.subf %227, %223 : vector<8x128xf32>
    %cst_121 = arith.constant 9.99999996E-13 : f32
    %229 = vector.broadcast %cst_121 : f32 to vector<8x128xf32>
    %230 = arith.maximumf %228, %229 : vector<8x128xf32>
    %231 = tpu.reciprocal %230 {approx = true} : vector<8x128xf32> -> vector<8x128xf32>
    %232 = arith.mulf %230, %231 : vector<8x128xf32>
    %cst_122 = arith.constant 2.000000e+00 : f32
    %233 = vector.broadcast %cst_122 : f32 to vector<8x128xf32>
    %234 = arith.subf %233, %232 : vector<8x128xf32>
    %235 = arith.mulf %231, %234 : vector<8x128xf32>
    %236 = arith.mulf %223, %235 : vector<8x128xf32>
    %c5 = arith.constant 5 : index
    %c0_123 = arith.constant 0 : index
    %c0_124 = arith.constant 0 : index
    %237 = vector.load %arg2[%c5, %c0_123, %c0_124] : memref<55x8x128xf32, #tpu.memory_space<vmem>>, vector<1x8x128xf32>
    %238 = vector.shape_cast %237 : vector<1x8x128xf32> to vector<8x128xf32>
    %c6 = arith.constant 6 : index
    %c0_125 = arith.constant 0 : index
    %c0_126 = arith.constant 0 : index
    %239 = vector.load %arg2[%c6, %c0_125, %c0_126] : memref<55x8x128xf32, #tpu.memory_space<vmem>>, vector<1x8x128xf32>
    %240 = vector.shape_cast %239 : vector<1x8x128xf32> to vector<8x128xf32>
    %c7 = arith.constant 7 : index
    %c0_127 = arith.constant 0 : index
    %c0_128 = arith.constant 0 : index
    %241 = vector.load %arg2[%c7, %c0_127, %c0_128] : memref<55x8x128xf32, #tpu.memory_space<vmem>>, vector<1x8x128xf32>
    %242 = vector.shape_cast %241 : vector<1x8x128xf32> to vector<8x128xf32>
    %c8 = arith.constant 8 : index
    %c0_129 = arith.constant 0 : index
    %c0_130 = arith.constant 0 : index
    %243 = vector.load %arg2[%c8, %c0_129, %c0_130] : memref<55x8x128xf32, #tpu.memory_space<vmem>>, vector<1x8x128xf32>
    %244 = vector.shape_cast %243 : vector<1x8x128xf32> to vector<8x128xf32>
    %c9 = arith.constant 9 : index
    %c0_131 = arith.constant 0 : index
    %c0_132 = arith.constant 0 : index
    %245 = vector.load %arg2[%c9, %c0_131, %c0_132] : memref<55x8x128xf32, #tpu.memory_space<vmem>>, vector<1x8x128xf32>
    %246 = vector.shape_cast %245 : vector<1x8x128xf32> to vector<8x128xf32>
    %247 = arith.mulf %246, %246 : vector<8x128xf32>
    %248 = arith.addf %192, %247 : vector<8x128xf32>
    %cst_133 = arith.constant 2.500000e-01 : f32
    %249 = vector.broadcast %cst_133 : f32 to vector<8x128xf32>
    %250 = arith.mulf %238, %249 : vector<8x128xf32>
    %cst_134 = arith.constant 5.000000e-01 : f32
    %251 = vector.broadcast %cst_134 : f32 to vector<8x128xf32>
    %252 = arith.mulf %251, %242 : vector<8x128xf32>
    %253 = arith.subf %250, %252 : vector<8x128xf32>
    %cst_135 = arith.constant 2.500000e-01 : f32
    %254 = vector.broadcast %cst_135 : f32 to vector<8x128xf32>
    %255 = arith.mulf %240, %254 : vector<8x128xf32>
    %cst_136 = arith.constant 5.000000e-01 : f32
    %256 = vector.broadcast %cst_136 : f32 to vector<8x128xf32>
    %257 = arith.mulf %256, %244 : vector<8x128xf32>
    %258 = arith.subf %255, %257 : vector<8x128xf32>
    %cst_137 = arith.constant 2.500000e-01 : f32
    %259 = vector.broadcast %cst_137 : f32 to vector<8x128xf32>
    %260 = arith.mulf %238, %259 : vector<8x128xf32>
    %cst_138 = arith.constant 5.000000e-01 : f32
    %261 = vector.broadcast %cst_138 : f32 to vector<8x128xf32>
    %262 = arith.mulf %261, %242 : vector<8x128xf32>
    %263 = arith.addf %260, %262 : vector<8x128xf32>
    %cst_139 = arith.constant 2.500000e-01 : f32
    %264 = vector.broadcast %cst_139 : f32 to vector<8x128xf32>
    %265 = arith.mulf %240, %264 : vector<8x128xf32>
    %cst_140 = arith.constant 5.000000e-01 : f32
    %266 = vector.broadcast %cst_140 : f32 to vector<8x128xf32>
    %267 = arith.mulf %266, %244 : vector<8x128xf32>
    %268 = arith.addf %265, %267 : vector<8x128xf32>
    %269 = arith.minimumf %263, %171 : vector<8x128xf32>
    %270 = arith.maximumf %253, %161 : vector<8x128xf32>
    %271 = arith.subf %269, %270 : vector<8x128xf32>
    %cst_141 = arith.constant 0.000000e+00 : f32
    %272 = vector.broadcast %cst_141 : f32 to vector<8x128xf32>
    %273 = arith.maximumf %271, %272 : vector<8x128xf32>
    %274 = arith.minimumf %268, %176 : vector<8x128xf32>
    %275 = arith.maximumf %258, %166 : vector<8x128xf32>
    %276 = arith.subf %274, %275 : vector<8x128xf32>
    %cst_142 = arith.constant 0.000000e+00 : f32
    %277 = vector.broadcast %cst_142 : f32 to vector<8x128xf32>
    %278 = arith.maximumf %276, %277 : vector<8x128xf32>
    %279 = arith.mulf %273, %278 : vector<8x128xf32>
    %280 = arith.subf %263, %253 : vector<8x128xf32>
    %281 = arith.subf %268, %258 : vector<8x128xf32>
    %282 = arith.mulf %280, %281 : vector<8x128xf32>
    %283 = arith.addf %282, %179 : vector<8x128xf32>
    %284 = arith.subf %283, %279 : vector<8x128xf32>
    %cst_143 = arith.constant 9.99999996E-13 : f32
    %285 = vector.broadcast %cst_143 : f32 to vector<8x128xf32>
    %286 = arith.maximumf %284, %285 : vector<8x128xf32>
    %287 = tpu.reciprocal %286 {approx = true} : vector<8x128xf32> -> vector<8x128xf32>
    %288 = arith.mulf %286, %287 : vector<8x128xf32>
    %cst_144 = arith.constant 2.000000e+00 : f32
    %289 = vector.broadcast %cst_144 : f32 to vector<8x128xf32>
    %290 = arith.subf %289, %288 : vector<8x128xf32>
    %291 = arith.mulf %287, %290 : vector<8x128xf32>
    %292 = arith.mulf %279, %291 : vector<8x128xf32>
    %293 = arith.cmpf ogt, %292, %236 : vector<8x128xf32>
    %294 = arith.select %293, %292, %236 : vector<8x128xi1>, vector<8x128xf32>
    %295 = arith.select %293, %238, %182 : vector<8x128xi1>, vector<8x128xf32>
    %296 = arith.select %293, %240, %184 : vector<8x128xi1>, vector<8x128xf32>
    %297 = arith.select %293, %242, %186 : vector<8x128xi1>, vector<8x128xf32>
    %298 = arith.select %293, %244, %188 : vector<8x128xi1>, vector<8x128xf32>
    %299 = arith.select %293, %246, %190 : vector<8x128xi1>, vector<8x128xf32>
    %cst_145 = arith.constant 1.000000e+00 : f32
    %300 = vector.broadcast %cst_145 : f32 to vector<8x128xf32>
    %301 = arith.subf %300, %4 : vector<8x128xf32>
    %302 = arith.mulf %248, %301 : vector<8x128xf32>
    %303 = arith.subf %299, %294 : vector<8x128xf32>
    %304 = arith.mulf %303, %303 : vector<8x128xf32>
    %cst_146 = arith.constant 0.000000e+00 : f32
    %305 = vector.broadcast %cst_146 : f32 to vector<8x128xf32>
    %306 = arith.select %6, %304, %305 : vector<8x128xi1>, vector<8x128xf32>
    %307 = math.sqrt %295 : vector<8x128xf32>
    %308 = math.sqrt %150 : vector<8x128xf32>
    %309 = arith.subf %307, %308 : vector<8x128xf32>
    %310 = arith.mulf %309, %309 : vector<8x128xf32>
    %311 = math.sqrt %296 : vector<8x128xf32>
    %312 = math.sqrt %152 : vector<8x128xf32>
    %313 = arith.subf %311, %312 : vector<8x128xf32>
    %314 = arith.mulf %313, %313 : vector<8x128xf32>
    %315 = arith.addf %310, %314 : vector<8x128xf32>
    %316 = math.sqrt %297 : vector<8x128xf32>
    %317 = math.sqrt %154 : vector<8x128xf32>
    %318 = arith.subf %316, %317 : vector<8x128xf32>
    %319 = arith.mulf %318, %318 : vector<8x128xf32>
    %320 = arith.addf %315, %319 : vector<8x128xf32>
    %321 = math.sqrt %298 : vector<8x128xf32>
    %322 = math.sqrt %156 : vector<8x128xf32>
    %323 = arith.subf %321, %322 : vector<8x128xf32>
    %324 = arith.mulf %323, %323 : vector<8x128xf32>
    %325 = arith.addf %320, %324 : vector<8x128xf32>
    %cst_147 = arith.constant 0.000000e+00 : f32
    %326 = vector.broadcast %cst_147 : f32 to vector<8x128xf32>
    %327 = arith.select %6, %325, %326 : vector<8x128xi1>, vector<8x128xf32>
    %c0_148 = arith.constant 0 : index
    %c0_149 = arith.constant 0 : index
    %c0_150 = arith.constant 0 : index
    %328 = vector.load %arg3[%c0_148, %c0_149, %c0_150] : memref<4x8x128xf32, #tpu.memory_space<vmem>>, vector<1x8x128xf32>
    %329 = vector.shape_cast %328 : vector<1x8x128xf32> to vector<8x128xf32>
    %330 = arith.addf %329, %148 : vector<8x128xf32>
    %c0_151 = arith.constant 0 : index
    %c0_152 = arith.constant 0 : index
    %c0_153 = arith.constant 0 : index
    %331 = vector.load %arg3[%c0_151, %c0_152, %c0_153] : memref<4x8x128xf32, #tpu.memory_space<vmem>>, vector<1x8x128xf32>
    %332 = vector.shape_cast %331 : vector<1x8x128xf32> to vector<8x128xf32>
    %333 = vector.shape_cast %330 : vector<8x128xf32> to vector<1x8x128xf32>
    tpu.vector_store %arg3[%c0_151, %c0_152, %c0_153], %333 {strides = array<i32>} : memref<4x8x128xf32, #tpu.memory_space<vmem>>, vector<1x8x128xf32>,
    %c1_154 = arith.constant 1 : index
    %c0_155 = arith.constant 0 : index
    %c0_156 = arith.constant 0 : index
    %334 = vector.load %arg3[%c1_154, %c0_155, %c0_156] : memref<4x8x128xf32, #tpu.memory_space<vmem>>, vector<1x8x128xf32>
    %335 = vector.shape_cast %334 : vector<1x8x128xf32> to vector<8x128xf32>
    %336 = arith.addf %335, %302 : vector<8x128xf32>
    %c1_157 = arith.constant 1 : index
    %c0_158 = arith.constant 0 : index
    %c0_159 = arith.constant 0 : index
    %337 = vector.load %arg3[%c1_157, %c0_158, %c0_159] : memref<4x8x128xf32, #tpu.memory_space<vmem>>, vector<1x8x128xf32>
    %338 = vector.shape_cast %337 : vector<1x8x128xf32> to vector<8x128xf32>
    %339 = vector.shape_cast %336 : vector<8x128xf32> to vector<1x8x128xf32>
    tpu.vector_store %arg3[%c1_157, %c0_158, %c0_159], %339 {strides = array<i32>} : memref<4x8x128xf32, #tpu.memory_space<vmem>>, vector<1x8x128xf32>,
    %c2_160 = arith.constant 2 : index
    %c0_161 = arith.constant 0 : index
    %c0_162 = arith.constant 0 : index
    %340 = vector.load %arg3[%c2_160, %c0_161, %c0_162] : memref<4x8x128xf32, #tpu.memory_space<vmem>>, vector<1x8x128xf32>
    %341 = vector.shape_cast %340 : vector<1x8x128xf32> to vector<8x128xf32>
    %342 = arith.addf %341, %306 : vector<8x128xf32>
    %c2_163 = arith.constant 2 : index
    %c0_164 = arith.constant 0 : index
    %c0_165 = arith.constant 0 : index
    %343 = vector.load %arg3[%c2_163, %c0_164, %c0_165] : memref<4x8x128xf32, #tpu.memory_space<vmem>>, vector<1x8x128xf32>
    %344 = vector.shape_cast %343 : vector<1x8x128xf32> to vector<8x128xf32>
    %345 = vector.shape_cast %342 : vector<8x128xf32> to vector<1x8x128xf32>
    tpu.vector_store %arg3[%c2_163, %c0_164, %c0_165], %345 {strides = array<i32>} : memref<4x8x128xf32, #tpu.memory_space<vmem>>, vector<1x8x128xf32>,
    %c3_166 = arith.constant 3 : index
    %c0_167 = arith.constant 0 : index
    %c0_168 = arith.constant 0 : index
    %346 = vector.load %arg3[%c3_166, %c0_167, %c0_168] : memref<4x8x128xf32, #tpu.memory_space<vmem>>, vector<1x8x128xf32>
    %347 = vector.shape_cast %346 : vector<1x8x128xf32> to vector<8x128xf32>
    %348 = arith.addf %347, %327 : vector<8x128xf32>
    %c3_169 = arith.constant 3 : index
    %c0_170 = arith.constant 0 : index
    %c0_171 = arith.constant 0 : index
    %349 = vector.load %arg3[%c3_169, %c0_170, %c0_171] : memref<4x8x128xf32, #tpu.memory_space<vmem>>, vector<1x8x128xf32>
    %350 = vector.shape_cast %349 : vector<1x8x128xf32> to vector<8x128xf32>
    %351 = vector.shape_cast %348 : vector<8x128xf32> to vector<1x8x128xf32>
    tpu.vector_store %arg3[%c3_169, %c0_170, %c0_171], %351 {strides = array<i32>} : memref<4x8x128xf32, #tpu.memory_space<vmem>>, vector<1x8x128xf32>,
    return
  }
  func.func @transform_0(%arg0: i32, %arg1: i32) -> (i32, i32, i32) {
    %c1_i32 = arith.constant 1 : i32
    %0 = arith.muli %arg0, %c1_i32 : i32
    %1 = arith.addi %0, %arg1 : i32
    %c0_i32 = arith.constant 0 : i32
    %c0_i32_0 = arith.constant 0 : i32
    %c0_i32_1 = arith.constant 0 : i32
    return %c0_i32, %1, %c0_i32_0 : i32, i32, i32
  }
  func.func @transform_1(%arg0: i32, %arg1: i32) -> (i32, i32, i32) {
    %c0_i32 = arith.constant 0 : i32
    %c0_i32_0 = arith.constant 0 : i32
    %c0_i32_1 = arith.constant 0 : i32
    return %arg0, %c0_i32, %c0_i32_0 : i32, i32, i32
  }
}

</mosaic_0001>

<llo_original>
// kernel: tpu_custom_call.1
$region0: #{tpu_custom_call.1}
  #allocation0 [shape = 'u32[]', space=smem, size = 0x4, offset = 0x4, fixed_abs, tag = 'smem constant byte address 0x4 - core index']
  #allocation1 [shape = 'u32[144,128]{1,0:T(1,128)}', space=vmem, size = 0x12000, scoped, tag = 'internal scratch']
  %s0 = inlined_call_operand.hbm [shape: f32[55,16,128], index: 0, kind: input, shape index: {}]
  %s1 = inlined_call_operand.hbm [shape: f32[8,8,128], index: 1, kind: output, shape index: {}]
  %s2 = sld [smem:[#allocation0]]
  $region45: #{tpu_custom_call.1} parent=0
    _
  %s4 = ssub.s32 1, %s2
  %s5 = scalar_select 0, %s4, %s2
  $region1: #{tpu_custom_call.1} parent=0
    #allocation2 [shape = 'u8[450560]{0}', space=vmem, size = 0x6e000, scoped, tag = 'input window, operand 0']
    #allocation3 [shape = 's32[2]{0}', space=sflag, size = 0x8, scoped, tag = 'scoped memory for tpu_custom_call.1']
    #allocation4 [shape = 's32[2]{0}', space=sflag, size = 0x8, scoped, tag = 'scoped memory for tpu_custom_call.1']
    #allocation5 [shape = 'u8[32768]{0}', space=vmem, size = 0x8000, scoped, tag = 'output window, operand 0']
    %6 = vsyncpa [#allocation3], 0
    %s7 = scalar_lea.sflag [#allocation3], 1
    %8 = vsyncpa %s7, 0
    %9 = vsyncpa [#allocation4], 0
    %s10 = scalar_lea.sflag [#allocation4], 1
    %11 = vsyncpa %s10, 0
    loop: start=0, step=1, limit=4
    $region2: #{tpu_custom_call.1} parent=1 // loop_pre_header
      _
    $region3: #{tpu_custom_call.1} parent=1 // loop_header
      %s13 = sphi 0, %s17
      %p14 = scmp.ge.s32.totalorder %s13, 4
      %s20 = sphi 0, %s32
      %s21 = sphi 0, %s28
      %s22 = sphi 0, %s20
      %s23 = sphi 0, %s21
      %s24 = sphi 0, %s22
      %s25 = sphi 0, %s23
      %s37 = sphi 0, %s39
      %s40 = sphi 0, %s37
      %s41 = sphi 0, %s40
      %s57 = sphi 0, %s41
      %s63 = sphi 0, %s65
      %s66 = sphi 0, %s63
      %s67 = sphi 0, %s66
      %s83 = sphi 0, %s67
    $region4: #{tpu_custom_call.1} parent=1 // loop_header_branch
      %16 = sbr.rel (%p14) target = $region8
    $region5: #{tpu_custom_call.1} parent=1 // loop_body
      %s18 = ssub.s32 %s13, 1
      %s19 = ssub.s32 %s13, 2
      %s26 = sadd.s32 1, %s21
      %p27 = scmp.ge.s32.totalorder %s26, 1
      %s28 = scalar_select %p27, 0, %s26
      %s29 = sadd.s32 1, %s20
      %s30 = scalar_select %p27, %s29, %s20
      %p31 = scmp.ge.s32.totalorder %s30, 2
      %s32 = scalar_select %p31, 0, %s30
      %s33 = sadd.s32 %s20, %s21
      %s34 = sadd.s32 %s32, %s28
      %s35 = ssub.s32 %s33, %s34
      %p36 = scmp.eq.s32.totalorder %s35, 0
      %s38 = sadd.s32 %s37, 1
      %s39 = scalar_select %p36, %s37, %s38
      %p42 = pneg %p36
      %p43 = scmp.eq.s32.totalorder %s13, 1
      %p44 = por %p42, %p43
      %p45 = scmp.ne.s32.totalorder %s37, %s40
      %p46 = scmp.eq.s32.totalorder %s13, 0
      %p47 = por %p45, %p46
      %p48 = scmp.ne.s32.totalorder %s37, %s40
      %p49 = scmp.eq.s32.totalorder %s18, 1
      %p50 = por %p48, %p49
      %p51 = scmp.ne.s32.totalorder %s40, %s41
      %p52 = scmp.eq.s32.totalorder %s18, 0
      %p53 = por %p51, %p52
      %p54 = scmp.ne.s32.totalorder %s40, %s41
      %p55 = scmp.eq.s32.totalorder %s19, 1
      %p56 = por %p54, %p55
      %p58 = scmp.ne.s32.totalorder %s41, %s57
      %p59 = scmp.eq.s32.totalorder %s19, 0
      %p60 = por %p58, %p59
      %s61 = ssub.s32 %s20, %s32
      %p62 = scmp.eq.s32.totalorder %s61, 0
      %s64 = sadd.s32 %s63, 1
      %s65 = scalar_select %p62, %s63, %s64
      %p68 = pneg %p62
      %p69 = scmp.eq.s32.totalorder %s13, 1
      %p70 = por %p68, %p69
      %p71 = scmp.ne.s32.totalorder %s63, %s66
      %p72 = scmp.eq.s32.totalorder %s13, 0
      %p73 = por %p71, %p72
      %p74 = scmp.ne.s32.totalorder %s63, %s66
      %p75 = scmp.eq.s32.totalorder %s18, 1
      %p76 = por %p74, %p75
      %p77 = scmp.ne.s32.totalorder %s66, %s67
      %p78 = scmp.eq.s32.totalorder %s18, 0
      %p79 = por %p77, %p78
      %p80 = scmp.ne.s32.totalorder %s66, %s67
      %p81 = scmp.eq.s32.totalorder %s19, 1
      %p82 = por %p80, %p81
      %p84 = scmp.ne.s32.totalorder %s67, %s83
      %p85 = scmp.eq.s32.totalorder %s19, 0
      %p86 = por %p84, %p85
      %p87 = scmp.le.s32.totalorder 1, %s13
      %p88 = scmp.lt.s32.totalorder %s13, 3
      %p89 = pnand %p87, %p88
      %p90 = pneg %p89
      // Predicated region
      $region9: #{tpu_custom_call.1} parent=5 // pred_check
        _
      $region10: #{tpu_custom_call.1} parent=5 // pred_check_branch
        %92 = sbr.rel (%p89) target = $region12
      $region11: #{tpu_custom_call.1} parent=5 // pred_region
        %s93 = ssub.s32 %s13, 1
      $region12: #{tpu_custom_call.1} parent=5 // pred_fallthru
        _
      %p94 = scmp.lt.s32.totalorder %s13, 2
      // Predicated region
      $region13: #{tpu_custom_call.1} parent=5 // pred_check
        %p95 = pneg %p94
      $region14: #{tpu_custom_call.1} parent=5 // pred_check_branch
        %97 = sbr.rel (%p95) target = $region16
      $region15: #{tpu_custom_call.1} parent=5 // pred_region
        // Predicated region
        $region17: #{tpu_custom_call.1} parent=15 // pred_check
          %p98 = pneg %p47
        $region18: #{tpu_custom_call.1} parent=15 // pred_check_branch
          %100 = sbr.rel (%p98) target = $region20
        $region19: #{tpu_custom_call.1} parent=15 // pred_region
          %s101 = sand.u32 %s37, 1
          %s102 = scalar_lea.sflag [#allocation3], %s101
          %s103 = sand.u32 %s37, 1
          %s104 = smul.addr %s103, 440
          %s105 = scalar_lea.vmem [#allocation2], %s104
          %s106 = sadd.s32 %s20, %s21
          %s108 = ssub.s32 7040, 7040
          %109 = vsyncadd %s102, %s108
          %s110 = smul.addr %s106, 128
          %s111 = scalar_lea.hbm %s0, %s110
          %s112 = sshll.u32 %s105, 4
          %s113 = int_to_ptr.vmem [resolvable:$true] %s112
          %118 = dma.hbm_to_vmem [thread:$0]  %s111, 7040, %s113, %s102, 256, 128, 8
        $region20: #{tpu_custom_call.1} parent=15 // pred_fallthru
          _
      $region16: #{tpu_custom_call.1} parent=5 // pred_fallthru
        _
      %p119 = scmp.le.s32.totalorder 1, %s13
      %p120 = scmp.lt.s32.totalorder %s13, 3
      %p121 = pnand %p119, %p120
      %p122 = pneg %p121
      // Predicated region
      $region21: #{tpu_custom_call.1} parent=5 // pred_check
        _
      $region22: #{tpu_custom_call.1} parent=5 // pred_check_branch
        %124 = sbr.rel (%p121) target = $region24
      $region23: #{tpu_custom_call.1} parent=5 // pred_region
        %s125 = ssub.s32 %s13, 1
        %s126 = sand.u32 %s40, 1
        %s127 = scalar_lea.sflag [#allocation3], %s126
        %s128 = sand.u32 %s40, 1
        %s129 = smul.addr %s128, 440
        %s130 = scalar_lea.vmem [#allocation2], %s129
        // Predicated region
        $region25: #{tpu_custom_call.1} parent=23 // pred_check
          %p131 = pneg %p53
        $region26: #{tpu_custom_call.1} parent=23 // pred_check_branch
          %133 = sbr.rel (%p131) target = $region28
        $region27: #{tpu_custom_call.1} parent=23 // pred_region
          %134 = dma.done %s127, 7040
        $region28: #{tpu_custom_call.1} parent=23 // pred_fallthru
          _
        %s135 = sand.u32 %s40, 1
        %s136 = scalar_lea.sflag [#allocation3], %s135
        %s137 = sand.u32 %s40, 1
        %s138 = smul.addr %s137, 440
        %s139 = scalar_lea.vmem [#allocation2], %s138
        %p140 = pneg %p53
        %p141 = pneg %p50
        %p142 = pneg %p79
        %p143 = pneg %p76
        %s144 = sand.u32 %s66, 1
        %s145 = scalar_lea.sflag [#allocation4], %s144
        %s146 = sand.u32 %s66, 1
        %s147 = smul.addr %s146, 32
        %s148 = scalar_lea.vmem [#allocation5], %s147
        %s149 = sadd.s32 %s22, %s23
        %s150 = smul.u32 4, %s22
        %p151 = scmp.eq.s32.totalorder %s23, 0
        // Predicated region
        $region29: #{tpu_custom_call.1} parent=23 // pred_check
          %p152 = pneg %p151
        $region30: #{tpu_custom_call.1} parent=23 // pred_check_branch
          %154 = sbr.rel (%p152) target = $region32
        $region31: #{tpu_custom_call.1} parent=23 // pred_region
          %155 = vst [vmem:[%s148] sm:$0xff] 0.0
          %156 = vst [vmem:[%s148 + $0x8] sm:$0xff] 0.0
          %157 = vst [vmem:[%s148 + $0x10] sm:$0xff] 0.0
          %158 = vst [vmem:[%s148 + $0x18] sm:$0xff] 0.0
        $region32: #{tpu_custom_call.1} parent=23 // pred_fallthru
          _
        %s159 = scalar_lea.vmem %s130, 432 [#allocation2]
        %v160 = vld [vmem:[%s159] sm:$0xff]
        %vm161 = vcmp.gt.f32.partialorder %v160, 0.5
        %s162 = scalar_lea.vmem %s130, 80 [#allocation2]
        %v163 = vld [vmem:[%s162] sm:$0xff]
        %s164 = scalar_lea.vmem %s130, 272 [#allocation2]
        %v165 = vld [vmem:[%s164] sm:$0xff]
        %v166 = vsub.f32 %v163, %v165
        %v167 = vmul.f32 %v166, %v166
        %v168 = vadd.f32 %v167, 0.0
        %s169 = scalar_lea.vmem %s130, 88 [#allocation2]
        %v170 = vld [vmem:[%s169] sm:$0xff]
        %s171 = scalar_lea.vmem %s130, 280 [#allocation2]
        %v172 = vld [vmem:[%s171] sm:$0xff]
        %v173 = vsub.f32 %v170, %v172
        %v174 = vmul.f32 %v173, %v173
        %v175 = vadd.f32 %v168, %v174
        %s176 = scalar_lea.vmem %s130, 96 [#allocation2]
        %v177 = vld [vmem:[%s176] sm:$0xff]
        %s178 = scalar_lea.vmem %s130, 288 [#allocation2]
        %v179 = vld [vmem:[%s178] sm:$0xff]
        %v180 = vsub.f32 %v177, %v179
        %v181 = vmul.f32 %v180, %v180
        %v182 = vadd.f32 %v175, %v181
        %s183 = scalar_lea.vmem %s130, 104 [#allocation2]
        %v184 = vld [vmem:[%s183] sm:$0xff]
        %s185 = scalar_lea.vmem %s130, 296 [#allocation2]
        %v186 = vld [vmem:[%s185] sm:$0xff]
        %v187 = vsub.f32 %v184, %v186
        %v188 = vmul.f32 %v187, %v187
        %v189 = vadd.f32 %v182, %v188
        %s190 = scalar_lea.vmem %s130, 112 [#allocation2]
        %v191 = vld [vmem:[%s190] sm:$0xff]
        %s192 = scalar_lea.vmem %s130, 304 [#allocation2]
        %v193 = vld [vmem:[%s192] sm:$0xff]
        %v194 = vsub.f32 %v191, %v193
        %v195 = vmul.f32 %v194, %v194
        %v196 = vadd.f32 %v189, %v195
        %s197 = scalar_lea.vmem %s130, 120 [#allocation2]
        %v198 = vld [vmem:[%s197] sm:$0xff]
        %s199 = scalar_lea.vmem %s130, 312 [#allocation2]
        %v200 = vld [vmem:[%s199] sm:$0xff]
        %v201 = vsub.f32 %v198, %v200
        %v202 = vmul.f32 %v201, %v201
        %v203 = vadd.f32 %v196, %v202
        %s204 = scalar_lea.vmem %s130, 128 [#allocation2]
        %v205 = vld [vmem:[%s204] sm:$0xff]
        %s206 = scalar_lea.vmem %s130, 320 [#allocation2]
        %v207 = vld [vmem:[%s206] sm:$0xff]
        %v208 = vsub.f32 %v205, %v207
        %v209 = vmul.f32 %v208, %v208
        %v210 = vadd.f32 %v203, %v209
        %s211 = scalar_lea.vmem %s130, 136 [#allocation2]
        %v212 = vld [vmem:[%s211] sm:$0xff]
        %s213 = scalar_lea.vmem %s130, 328 [#allocation2]
        %v214 = vld [vmem:[%s213] sm:$0xff]
        %v215 = vsub.f32 %v212, %v214
        %v216 = vmul.f32 %v215, %v215
        %v217 = vadd.f32 %v210, %v216
        %s218 = scalar_lea.vmem %s130, 144 [#allocation2]
        %v219 = vld [vmem:[%s218] sm:$0xff]
        %s220 = scalar_lea.vmem %s130, 336 [#allocation2]
        %v221 = vld [vmem:[%s220] sm:$0xff]
        %v222 = vsub.f32 %v219, %v221
        %v223 = vmul.f32 %v222, %v222
        %v224 = vadd.f32 %v217, %v223
        %s225 = scalar_lea.vmem %s130, 152 [#allocation2]
        %v226 = vld [vmem:[%s225] sm:$0xff]
        %s227 = scalar_lea.vmem %s130, 344 [#allocation2]
        %v228 = vld [vmem:[%s227] sm:$0xff]
        %v229 = vsub.f32 %v226, %v228
        %v230 = vmul.f32 %v229, %v229
        %v231 = vadd.f32 %v224, %v230
        %s232 = scalar_lea.vmem %s130, 160 [#allocation2]
        %v233 = vld [vmem:[%s232] sm:$0xff]
        %s234 = scalar_lea.vmem %s130, 352 [#allocation2]
        %v235 = vld [vmem:[%s234] sm:$0xff]
        %v236 = vsub.f32 %v233, %v235
        %v237 = vmul.f32 %v236, %v236
        %v238 = vadd.f32 %v231, %v237
        %s239 = scalar_lea.vmem %s130, 168 [#allocation2]
        %v240 = vld [vmem:[%s239] sm:$0xff]
        %s241 = scalar_lea.vmem %s130, 360 [#allocation2]
        %v242 = vld [vmem:[%s241] sm:$0xff]
        %v243 = vsub.f32 %v240, %v242
        %v244 = vmul.f32 %v243, %v243
        %v245 = vadd.f32 %v238, %v244
        %s246 = scalar_lea.vmem %s130, 176 [#allocation2]
        %v247 = vld [vmem:[%s246] sm:$0xff]
        %s248 = scalar_lea.vmem %s130, 368 [#allocation2]
        %v249 = vld [vmem:[%s248] sm:$0xff]
        %v250 = vsub.f32 %v247, %v249
        %v251 = vmul.f32 %v250, %v250
        %v252 = vadd.f32 %v245, %v251
        %s253 = scalar_lea.vmem %s130, 184 [#allocation2]
        %v254 = vld [vmem:[%s253] sm:$0xff]
        %s255 = scalar_lea.vmem %s130, 376 [#allocation2]
        %v256 = vld [vmem:[%s255] sm:$0xff]
        %v257 = vsub.f32 %v254, %v256
        %v258 = vmul.f32 %v257, %v257
        %v259 = vadd.f32 %v252, %v258
        %s260 = scalar_lea.vmem %s130, 192 [#allocation2]
        %v261 = vld [vmem:[%s260] sm:$0xff]
        %s262 = scalar_lea.vmem %s130, 384 [#allocation2]
        %v263 = vld [vmem:[%s262] sm:$0xff]
        %v264 = vsub.f32 %v261, %v263
        %v265 = vmul.f32 %v264, %v264
        %v266 = vadd.f32 %v259, %v265
        %s267 = scalar_lea.vmem %s130, 200 [#allocation2]
        %v268 = vld [vmem:[%s267] sm:$0xff]
        %s269 = scalar_lea.vmem %s130, 392 [#allocation2]
        %v270 = vld [vmem:[%s269] sm:$0xff]
        %v271 = vsub.f32 %v268, %v270
        %v272 = vmul.f32 %v271, %v271
        %v273 = vadd.f32 %v266, %v272
        %s274 = scalar_lea.vmem %s130, 208 [#allocation2]
        %v275 = vld [vmem:[%s274] sm:$0xff]
        %s276 = scalar_lea.vmem %s130, 400 [#allocation2]
        %v277 = vld [vmem:[%s276] sm:$0xff]
        %v278 = vsub.f32 %v275, %v277
        %v279 = vmul.f32 %v278, %v278
        %v280 = vadd.f32 %v273, %v279
        %s281 = scalar_lea.vmem %s130, 216 [#allocation2]
        %v282 = vld [vmem:[%s281] sm:$0xff]
        %s283 = scalar_lea.vmem %s130, 408 [#allocation2]
        %v284 = vld [vmem:[%s283] sm:$0xff]
        %v285 = vsub.f32 %v282, %v284
        %v286 = vmul.f32 %v285, %v285
        %v287 = vadd.f32 %v280, %v286
        %s288 = scalar_lea.vmem %s130, 224 [#allocation2]
        %v289 = vld [vmem:[%s288] sm:$0xff]
        %s290 = scalar_lea.vmem %s130, 416 [#allocation2]
        %v291 = vld [vmem:[%s290] sm:$0xff]
        %v292 = vsub.f32 %v289, %v291
        %v293 = vmul.f32 %v292, %v292
        %v294 = vadd.f32 %v287, %v293
        %s295 = scalar_lea.vmem %s130, 232 [#allocation2]
        %v296 = vld [vmem:[%s295] sm:$0xff]
        %s297 = scalar_lea.vmem %s130, 424 [#allocation2]
        %v298 = vld [vmem:[%s297] sm:$0xff]
        %v299 = vsub.f32 %v296, %v298
        %v300 = vmul.f32 %v299, %v299
        %v301 = vadd.f32 %v294, %v300
        %v302 = vmul.f32 %v301, %v160
        %s303 = scalar_lea.vmem %s130, 240 [#allocation2]
        %v304 = vld [vmem:[%s303] sm:$0xff]
        %s305 = scalar_lea.vmem %s130, 248 [#allocation2]
        %v306 = vld [vmem:[%s305] sm:$0xff]
        %s307 = scalar_lea.vmem %s130, 256 [#allocation2]
        %v308 = vld [vmem:[%s307] sm:$0xff]
        %s309 = scalar_lea.vmem %s130, 264 [#allocation2]
        %v310 = vld [vmem:[%s309] sm:$0xff]
        %v311 = vmul.f32 %v304, 0.25
        %v312 = vmul.f32 %v308, 0.5
        %v313 = vsub.f32 %v311, %v312
        %v314 = vmul.f32 %v306, 0.25
        %v315 = vmul.f32 %v310, 0.5
        %v316 = vsub.f32 %v314, %v315
        %v317 = vadd.f32 %v311, %v312
        %v318 = vadd.f32 %v314, %v315
        %v319 = vsub.f32 %v317, %v313
        %v320 = vsub.f32 %v318, %v316
        %v321 = vmul.f32 %v319, %v320
        %v322 = vld [vmem:[%s130] sm:$0xff]
        %s323 = scalar_lea.vmem %s130, 8 [#allocation2]
        %v324 = vld [vmem:[%s323] sm:$0xff]
        %s325 = scalar_lea.vmem %s130, 16 [#allocation2]
        %v326 = vld [vmem:[%s325] sm:$0xff]
        %s327 = scalar_lea.vmem %s130, 24 [#allocation2]
        %v328 = vld [vmem:[%s327] sm:$0xff]
        %s329 = scalar_lea.vmem %s130, 32 [#allocation2]
        %v330 = vld [vmem:[%s329] sm:$0xff]
        %v331 = vmul.f32 %v330, %v330
        %v332 = vadd.f32 %v331, 0.0
        %v333 = vmul.f32 %v322, 0.25
        %v334 = vmul.f32 %v326, 0.5
        %v335 = vsub.f32 %v333, %v334
        %v336 = vmul.f32 %v324, 0.25
        %v337 = vmul.f32 %v328, 0.5
        %v338 = vsub.f32 %v336, %v337
        %v339 = vadd.f32 %v333, %v334
        %v340 = vadd.f32 %v336, %v337
        %v341 = vmin.f32 %v339, %v317
        %v342 = vmax.f32 %v335, %v313
        %v343 = vsub.f32 %v341, %v342
        %v344 = vmax.f32 %v343, 0.0
        %v345 = vmin.f32 %v340, %v318
        %v346 = vmax.f32 %v338, %v316
        %v347 = vsub.f32 %v345, %v346
        %v348 = vmax.f32 %v347, 0.0
        %v349 = vmul.f32 %v344, %v348
        %v350 = vsub.f32 %v339, %v335
        %v351 = vsub.f32 %v340, %v338
        %v352 = vmul.f32 %v350, %v351
        %v353 = vadd.f32 %v352, %v321
        %v354 = vsub.f32 %v353, %v349
        %v355 = vmax.f32 %v354, 1e-12
        %v356 = vrcp.pop %v355
        %v357 = vmul.f32 %v355, %v356
        %v358 = vsub.f32 2.0, %v357
        %v359 = vmul.f32 %v356, %v358
        %v360 = vmul.f32 %v349, %v359
        %s361 = scalar_lea.vmem %s130, 40 [#allocation2]
        %v362 = vld [vmem:[%s361] sm:$0xff]
        %s363 = scalar_lea.vmem %s130, 48 [#allocation2]
        %v364 = vld [vmem:[%s363] sm:$0xff]
        %s365 = scalar_lea.vmem %s130, 56 [#allocation2]
        %v366 = vld [vmem:[%s365] sm:$0xff]
        %s367 = scalar_lea.vmem %s130, 64 [#allocation2]
        %v368 = vld [vmem:[%s367] sm:$0xff]
        %s369 = scalar_lea.vmem %s130, 72 [#allocation2]
        %v370 = vld [vmem:[%s369] sm:$0xff]
        %v371 = vmul.f32 %v370, %v370
        %v372 = vadd.f32 %v332, %v371
        %v373 = vmul.f32 %v362, 0.25
        %v374 = vmul.f32 %v366, 0.5
        %v375 = vsub.f32 %v373, %v374
        %v376 = vmul.f32 %v364, 0.25
        %v377 = vmul.f32 %v368, 0.5
        %v378 = vsub.f32 %v376, %v377
        %v379 = vadd.f32 %v373, %v374
        %v380 = vadd.f32 %v376, %v377
        %v381 = vmin.f32 %v379, %v317
        %v382 = vmax.f32 %v375, %v313
        %v383 = vsub.f32 %v381, %v382
        %v384 = vmax.f32 %v383, 0.0
        %v385 = vmin.f32 %v380, %v318
        %v386 = vmax.f32 %v378, %v316
        %v387 = vsub.f32 %v385, %v386
        %v388 = vmax.f32 %v387, 0.0
        %v389 = vmul.f32 %v384, %v388
        %v390 = vsub.f32 %v379, %v375
        %v391 = vsub.f32 %v380, %v378
        %v392 = vmul.f32 %v390, %v391
        %v393 = vadd.f32 %v392, %v321
        %v394 = vsub.f32 %v393, %v389
        %v395 = vmax.f32 %v394, 1e-12
        %v396 = vrcp.pop %v395
        %v397 = vmul.f32 %v395, %v396
        %v398 = vsub.f32 2.0, %v397
        %v399 = vmul.f32 %v396, %v398
        %v400 = vmul.f32 %v389, %v399
        %vm401 = vcmp.gt.f32.partialorder %v400, %v360
        %v402 = vsel %vm401, %v400, %v360
        %v403 = vsel %vm401, %v362, %v322
        %v404 = vsel %vm401, %v364, %v324
        %v405 = vsel %vm401, %v366, %v326
        %v406 = vsel %vm401, %v368, %v328
        %v407 = vsel %vm401, %v370, %v330
        %v408 = vsub.f32 1.0, %v160
        %v409 = vmul.f32 %v372, %v408
        %v410 = vsub.f32 %v407, %v402
        %v411 = vmul.f32 %v410, %v410
        %v412 = vsel %vm161, %v411, 0.0
        %v413 = vrsqrt.pop %v403
        %v414 = vmul.f32 %v403, %v413
        %vm415 = vcmp.eq.f32.partialorder %v403, inf
        %v416 = vsel %vm415, %v403, %v414
        %vm417 = vcmp.eq.f32.partialorder %v403, 0.0
        %v418 = vand.u32 %v403, 2147483648
        %v419 = vsel %vm417, %v418, %v416
        %v420 = vrsqrt.pop %v304
        %v421 = vmul.f32 %v304, %v420
        %vm422 = vcmp.eq.f32.partialorder %v304, inf
        %v423 = vsel %vm422, %v304, %v421
        %vm424 = vcmp.eq.f32.partialorder %v304, 0.0
        %v425 = vand.u32 %v304, 2147483648
        %v426 = vsel %vm424, %v425, %v423
        %v427 = vsub.f32 %v419, %v426
        %v428 = vmul.f32 %v427, %v427
        %v429 = vrsqrt.pop %v404
        %v430 = vmul.f32 %v404, %v429
        %vm431 = vcmp.eq.f32.partialorder %v404, inf
        %v432 = vsel %vm431, %v404, %v430
        %vm433 = vcmp.eq.f32.partialorder %v404, 0.0
        %v434 = vand.u32 %v404, 2147483648
        %v435 = vsel %vm433, %v434, %v432
        %v436 = vrsqrt.pop %v306
        %v437 = vmul.f32 %v306, %v436
        %vm438 = vcmp.eq.f32.partialorder %v306, inf
        %v439 = vsel %vm438, %v306, %v437
        %vm440 = vcmp.eq.f32.partialorder %v306, 0.0
        %v441 = vand.u32 %v306, 2147483648
        %v442 = vsel %vm440, %v441, %v439
        %v443 = vsub.f32 %v435, %v442
        %v444 = vmul.f32 %v443, %v443
        %v445 = vadd.f32 %v428, %v444
        %v446 = vrsqrt.pop %v405
        %v447 = vmul.f32 %v405, %v446
        %vm448 = vcmp.eq.f32.partialorder %v405, inf
        %v449 = vsel %vm448, %v405, %v447
        %vm450 = vcmp.eq.f32.partialorder %v405, 0.0
        %v451 = vand.u32 %v405, 2147483648
        %v452 = vsel %vm450, %v451, %v449
        %v453 = vrsqrt.pop %v308
        %v454 = vmul.f32 %v308, %v453
        %vm455 = vcmp.eq.f32.partialorder %v308, inf
        %v456 = vsel %vm455, %v308, %v454
        %vm457 = vcmp.eq.f32.partialorder %v308, 0.0
        %v458 = vand.u32 %v308, 2147483648
        %v459 = vsel %vm457, %v458, %v456
        %v460 = vsub.f32 %v452, %v459
        %v461 = vmul.f32 %v460, %v460
        %v462 = vadd.f32 %v445, %v461
        %v463 = vrsqrt.pop %v406
        %v464 = vmul.f32 %v406, %v463
        %vm465 = vcmp.eq.f32.partialorder %v406, inf
        %v466 = vsel %vm465, %v406, %v464
        %vm467 = vcmp.eq.f32.partialorder %v406, 0.0
        %v468 = vand.u32 %v406, 2147483648
        %v469 = vsel %vm467, %v468, %v466
        %v470 = vrsqrt.pop %v310
        %v471 = vmul.f32 %v310, %v470
        %vm472 = vcmp.eq.f32.partialorder %v310, inf
        %v473 = vsel %vm472, %v310, %v471
        %vm474 = vcmp.eq.f32.partialorder %v310, 0.0
        %v475 = vand.u32 %v310, 2147483648
        %v476 = vsel %vm474, %v475, %v473
        %v477 = vsub.f32 %v469, %v476
        %v478 = vmul.f32 %v477, %v477
        %v479 = vadd.f32 %v462, %v478
        %v480 = vsel %vm161, %v479, 0.0
        %v481 = vld [vmem:[%s148] sm:$0xff]
        %v482 = vadd.f32 %v481, %v302
        %483 = vst [vmem:[%s148] sm:$0xff] %v482
        %s484 = scalar_lea.vmem %s148, 8 [#allocation5]
        %v485 = vld [vmem:[%s484] sm:$0xff]
        %v486 = vadd.f32 %v485, %v409
        %487 = vst [vmem:[%s484] sm:$0xff] %v486
        %s488 = scalar_lea.vmem %s148, 16 [#allocation5]
        %v489 = vld [vmem:[%s488] sm:$0xff]
        %v490 = vadd.f32 %v489, %v412
        %491 = vst [vmem:[%s488] sm:$0xff] %v490
        %s492 = scalar_lea.vmem %s148, 24 [#allocation5]
        %v493 = vld [vmem:[%s492] sm:$0xff]
        %v494 = vadd.f32 %v493, %v480
        %495 = vst [vmem:[%s492] sm:$0xff] %v494
        %s496 = sand.u32 %s66, 1
        %s497 = scalar_lea.sflag [#allocation4], %s496
        %s498 = sand.u32 %s66, 1
        %s499 = smul.addr %s498, 32
        %s500 = scalar_lea.vmem [#allocation5], %s499
        // Predicated region
        $region33: #{tpu_custom_call.1} parent=23 // pred_check
          %p501 = pneg %p76
        $region34: #{tpu_custom_call.1} parent=23 // pred_check_branch
          %503 = sbr.rel (%p501) target = $region36
        $region35: #{tpu_custom_call.1} parent=23 // pred_region
          %s504 = smul.u32 4, %s22
          %s506 = ssub.s32 512, 512
          %507 = vsyncadd %s497, %s506
          %s508 = smul.addr %s504, 128
          %s509 = scalar_lea.hbm %s1, %s508
          %s510 = sshll.u32 %s500, 4
          %s511 = int_to_ptr.vmem [resolvable:$true] %s510
          %516 = dma.vmem_to_hbm [thread:$0]  %s511, 512, %s509, %s497, 128, 128, 8
        $region36: #{tpu_custom_call.1} parent=23 // pred_fallthru
          _
      $region24: #{tpu_custom_call.1} parent=5 // pred_fallthru
        _
      %p517 = scmp.le.s32.totalorder 2, %s13
      // Predicated region
      $region37: #{tpu_custom_call.1} parent=5 // pred_check
        %p518 = pneg %p517
      $region38: #{tpu_custom_call.1} parent=5 // pred_check_branch
        %520 = sbr.rel (%p518) target = $region40
      $region39: #{tpu_custom_call.1} parent=5 // pred_region
        %s521 = ssub.s32 %s13, 2
        // Predicated region
        $region41: #{tpu_custom_call.1} parent=39 // pred_check
          %p522 = pneg %p82
        $region42: #{tpu_custom_call.1} parent=39 // pred_check_branch
          %524 = sbr.rel (%p522) target = $region44
        $region43: #{tpu_custom_call.1} parent=39 // pred_region
          %s525 = sand.u32 %s67, 1
          %s526 = scalar_lea.sflag [#allocation4], %s525
          %s527 = sand.u32 %s67, 1
          %s528 = smul.addr %s527, 32
          %s529 = scalar_lea.vmem [#allocation5], %s528
          %530 = dma.done %s526, 512
        $region44: #{tpu_custom_call.1} parent=39 // pred_fallthru
          _
      $region40: #{tpu_custom_call.1} parent=5 // pred_fallthru
        _
    $region6: #{tpu_custom_call.1} parent=1 // loop_footer
      %s17 = sadd.s32 1, %s13
    $region7: #{tpu_custom_call.1} parent=1 // loop_footer_branch
      %12 = sbr.rel target = $region3
    $region8: #{tpu_custom_call.1} parent=1 // loop_exit
      _
    %531 = vsyncpa [#allocation3], 1
    %s532 = scalar_lea.sflag [#allocation3], 1
    %533 = vsyncpa %s532, 1
    %534 = vsyncpa [#allocation4], 1
    %s535 = scalar_lea.sflag [#allocation4], 1
    %536 = vsyncpa %s535, 1

</llo_original>
